<compile_context>
chip_gen: v6e
topology: v6e:2x2x1
jax: 0.10.0
libtpu: 0.0.40
codegen_flags: <defaults>
</compile_context>

<pallas_src>
import jax
import jax.numpy as jnp
from jax.experimental import pallas as pl
from jax.experimental.pallas import tpu as pltpu


def _inverse_scaler_kernel(x_ref, s_ref, b_ref, o_ref):
    # y = x * std + mean  (pure VPU multiply-add; std/mean are resident (1, W)
    # rows, broadcast over the row tile).  Compute in f32, cast once on store.
    x = x_ref[...].astype(jnp.float32)
    o_ref[...] = (x * s_ref[...] + b_ref[...]).astype(o_ref.dtype)


def _round_up(a: int, b: int) -> int:
    return ((a + b - 1) // b) * b


def _default_tile_rows() -> int:
    # v7x has ~2.3x the HBM bandwidth of v6e; use bigger steps there so the
    # ~0.35 us per-grid-step overhead stays amortized.  v5e/v6e: 1024 rows
    # (512 KiB/buffer) is already ~85%+ of roofline.
    try:
        kind = jax.devices()[0].device_kind.lower()
    except Exception:  # pragma: no cover - defensive
        return 1024
    return 4096 if "v7" in kind else 1024


def inverse_standard_scaler(x, std, mean, *, tile_rows=None,
                            min_pallas_bytes=1 << 20):
    """y = x * std + mean (InverseStandardScaler.forward after .fit).

    x: (N, D); std, mean: (D,).  Returns (N, D) in x.dtype.
    """
    N, D = x.shape
    dtype = x.dtype
    itemsize = jnp.dtype(dtype).itemsize

    scale_f32 = std.astype(jnp.float32)
    shift_f32 = mean.astype(jnp.float32)

    # ---- Small-input fast path: let XLA fuse the elementwise op. -----------
    if N * D * itemsize < min_pallas_bytes:
        return (x.astype(jnp.float32) * scale_f32 + shift_f32).astype(dtype)

    # ---- Lane-dense fold (only when it is exact, i.e. zero-copy). ----------
    rep = 1
    if D < 128 and 128 % D == 0 and N % (128 // D) == 0:
        rep = 128 // D
    n_rows = N // rep
    W = D * rep                      # kernel lane width == full last dim
    xp = x.reshape(n_rows, W) if rep > 1 else x
    scale = (jnp.tile(scale_f32, rep) if rep > 1 else scale_f32).reshape(1, W)
    shift = (jnp.tile(shift_f32, rep) if rep > 1 else shift_f32).reshape(1, W)

    # ---- Row-tile selection -------------------------------------------------
    if tile_rows is None:
        tile_rows = _default_tile_rows()
    pack = {1: 32, 2: 16, 4: 8}.get(itemsize, 8)   # sublane pack per dtype
    w_layout = _round_up(W, 128)                   # VMEM lane layout width
    # Keep 2 (double-buffer) x 2 (in+out) x tile under ~16 MiB (safe even for
    # v7x's 32 MiB scoped-VMEM default).
    vmem_budget = 16 * 1024 * 1024
    tr_cap = max(pack, (vmem_budget // (4 * w_layout * itemsize)) // pack * pack)
    tile_rows = min(tile_rows, tr_cap)

    if n_rows <= tile_rows:
        if n_rows >= 4 * pack:
            # Split in two so the "parallel" grid axis can shard across v7x's
            # 2 TensorCores instead of leaving one idle.
            tr = _round_up(pl.cdiv(n_rows, 2), pack)
        else:
            tr = n_rows              # full-extent block: exempt from (8,128)
    else:
        steps = pl.cdiv(n_rows, tile_rows)
        tr = _round_up(pl.cdiv(n_rows, steps), pack)
    grid = pl.cdiv(n_rows, tr)

    cost = pl.CostEstimate(
        flops=2 * n_rows * W,
        transcendentals=0,
        bytes_accessed=2 * n_rows * W * itemsize + 2 * W * 4,
    )

    out = pl.pallas_call(
        _inverse_scaler_kernel,
        out_shape=jax.ShapeDtypeStruct((n_rows, W), dtype),
        grid_spec=pltpu.PrefetchScalarGridSpec(
            num_scalar_prefetch=0,
            grid=(grid,),
            in_specs=[
                pl.BlockSpec((tr, W), lambda i: (i, 0)),   # streamed x tile
                pl.BlockSpec((1, W), lambda i: (0, 0)),    # resident std row
                pl.BlockSpec((1, W), lambda i: (0, 0)),    # resident mean row
            ],
            out_specs=pl.BlockSpec((tr, W), lambda i: (i, 0)),
        ),
        compiler_params=pltpu.CompilerParams(
            dimension_semantics=("parallel",)),
        cost_estimate=cost,
    )(xp, scale, shift)

    return out.reshape(N, D) if rep > 1 else out


if __name__ == "__main__":
    key = jax.random.PRNGKey(0)
    k_fit, k_x, k_fit2, k_x2 = jax.random.split(key, 4)

    # ---- Case 1: D divides 128 -> lane-dense fold path ----------------------
    N, D = 16, 32
    # Deterministically reproduce InverseStandardScaler.fit():
    #   weight = diag(std(fit_data, dim=0, unbiased=False)), bias = mean(...)
    fit_data = jax.random.normal(k_fit, (64, D), dtype=jnp.float32) * 2.5 + 0.7
    std = jnp.std(fit_data, axis=0)    # population std (ddof=0)
    avg = jnp.mean(fit_data, axis=0)
    x = jax.random.normal(k_x, (N, D), dtype=jnp.float32)

    y = inverse_standard_scaler(x, std, avg, min_pallas_bytes=0)  # force kernel
    y = jax.block_until_ready(y)
    y_ref = x @ jnp.diag(std).T + avg   # original nn.Linear semantics
    assert jnp.allclose(y, y_ref, atol=1e-5, rtol=1e-5), "case 1 mismatch"

    # ---- Case 2: ragged rows + lane width not a multiple of 128 -------------
    N2, D2 = 37, 48
    fit2 = jax.random.normal(k_fit2, (64, D2), dtype=jnp.float32) * 1.3 - 0.2
    std2 = jnp.std(fit2, axis=0)
    avg2 = jnp.mean(fit2, axis=0)
    x2 = jax.random.normal(k_x2, (N2, D2), dtype=jnp.float32)

    y2 = inverse_standard_scaler(x2, std2, avg2, min_pallas_bytes=0)
    y2 = jax.block_until_ready(y2)
    y2_ref = x2 @ jnp.diag(std2).T + avg2
    assert jnp.allclose(y2, y2_ref, atol=1e-5, rtol=1e-5), "case 2 mismatch"

    print("KERNEL_OK")
</pallas_src>

<mosaic_0001>
module attributes {stable_mosaic.version = 11 : i64} {
  func.func @_inverse_scaler_kernel(%arg0: i32, %arg1: memref<4x128xf32, #tpu.memory_space<vmem>>, %arg2: memref<1x128xf32, #tpu.memory_space<vmem>>, %arg3: memref<1x128xf32, #tpu.memory_space<vmem>>, %arg4: memref<4x128xf32, #tpu.memory_space<vmem>>) attributes {dimension_semantics = [#tpu.dimension_semantics<parallel>], iteration_bounds = array<i64: 1>, scalar_prefetch = 0 : i64, scratch_operands = 0 : i64, tpu.core_type = #tpu.core_type<tc>, window_params = [{transform_indices = @transform_0, window_bounds = array<i64: 4, 128>}, {pipeline_mode = #tpu.pipeline_mode<synchronous>, transform_indices = @transform_1, window_bounds = array<i64: 1, 128>}, {pipeline_mode = #tpu.pipeline_mode<synchronous>, transform_indices = @transform_2, window_bounds = array<i64: 1, 128>}, {transform_indices = @transform_3, window_bounds = array<i64: 4, 128>}]} {
    %c0 = arith.constant 0 : index
    %c0_0 = arith.constant 0 : index
    %0 = vector.load %arg1[%c0, %c0_0] : memref<4x128xf32, #tpu.memory_space<vmem>>, vector<4x128xf32>
    %c0_1 = arith.constant 0 : index
    %c0_2 = arith.constant 0 : index
    %1 = vector.load %arg2[%c0_1, %c0_2] : memref<1x128xf32, #tpu.memory_space<vmem>>, vector<1x128xf32>
    %2 = vector.broadcast %1 : vector<1x128xf32> to vector<4x128xf32>
    %3 = arith.mulf %0, %2 : vector<4x128xf32>
    %c0_3 = arith.constant 0 : index
    %c0_4 = arith.constant 0 : index
    %4 = vector.load %arg3[%c0_3, %c0_4] : memref<1x128xf32, #tpu.memory_space<vmem>>, vector<1x128xf32>
    %5 = vector.broadcast %4 : vector<1x128xf32> to vector<4x128xf32>
    %6 = arith.addf %3, %5 : vector<4x128xf32>
    %c0_5 = arith.constant 0 : index
    %c0_6 = arith.constant 0 : index
    %7 = vector.load %arg4[%c0_5, %c0_6] : memref<4x128xf32, #tpu.memory_space<vmem>>, vector<4x128xf32>
    tpu.vector_store %arg4[%c0_5, %c0_6], %6 {strides = array<i32>} : memref<4x128xf32, #tpu.memory_space<vmem>>, vector<4x128xf32>,
    return
  }
  func.func @transform_0(%arg0: i32) -> (i32, i32) {
    %c0_i32 = arith.constant 0 : i32
    %c0_i32_0 = arith.constant 0 : i32
    return %arg0, %c0_i32 : i32, i32
  }
  func.func @transform_1(%arg0: i32) -> (i32, i32) {
    %c0_i32 = arith.constant 0 : i32
    %c0_i32_0 = arith.constant 0 : i32
    %c0_i32_1 = arith.constant 0 : i32
    return %c0_i32, %c0_i32_0 : i32, i32
  }
  func.func @transform_2(%arg0: i32) -> (i32, i32) {
    %c0_i32 = arith.constant 0 : i32
    %c0_i32_0 = arith.constant 0 : i32
    %c0_i32_1 = arith.constant 0 : i32
    return %c0_i32, %c0_i32_0 : i32, i32
  }
  func.func @transform_3(%arg0: i32) -> (i32, i32) {
    %c0_i32 = arith.constant 0 : i32
    %c0_i32_0 = arith.constant 0 : i32
    return %arg0, %c0_i32 : i32, i32
  }
}

</mosaic_0001>

<llo_original>
// kernel: tpu_custom_call.1
$region0: #{tpu_custom_call.1}
  #allocation0 [shape = 'u32[]', space=smem, size = 0x4, offset = 0x4, fixed_abs, tag = 'smem constant byte address 0x4 - core index']
  #allocation1 [shape = 'u32[144,128]{1,0:T(1,128)}', space=vmem, size = 0x12000, scoped, tag = 'internal scratch']
  %s0 = inlined_call_operand.hbm [shape: f32[4,128], index: 0, kind: input, shape index: {}]
  %s1 = inlined_call_operand.vmem [shape: f32[1,128], index: 1, kind: input, shape index: {}]
  %s2 = inlined_call_operand.vmem [shape: f32[1,128], index: 2, kind: input, shape index: {}]
  %s3 = inlined_call_operand.hbm [shape: f32[4,128], index: 3, kind: output, shape index: {}]
  %s4 = sld [smem:[#allocation0]]
  $region26: #{tpu_custom_call.1} parent=0
    _
  %s6 = ssub.s32 1, %s4
  %s7 = scalar_select 0, %s6, %s4
  $region1: #{tpu_custom_call.1} parent=0
    #allocation2 [shape = 'u8[2048]{0}', space=vmem, size = 0x800, scoped, tag = 'input window, operand 0, single buffered']
    #allocation3 [shape = 's32[1]{0}', space=sflag, size = 0x4, scoped, tag = 'scoped memory for tpu_custom_call.1']
    #allocation4 [shape = 's32[1]{0}', space=sflag, size = 0x4, scoped, tag = 'scoped memory for tpu_custom_call.1']
    #allocation5 [shape = 'u8[2048]{0}', space=vmem, size = 0x800, scoped, tag = 'output window, operand 0, single buffered']
    %8 = vsyncpa [#allocation3], 0
    %9 = vsyncpa [#allocation4], 0
    // Predicated region
    $region2: #{tpu_custom_call.1} parent=1 // pred_check
      _
    $region3: #{tpu_custom_call.1} parent=1 // pred_check_branch
      %11 = sbr.rel (0) target = $region5
    $region4: #{tpu_custom_call.1} parent=1 // pred_region
      %s13 = ssub.s32 64, 64
      %14 = vsyncadd [#allocation3], %s13
      %s16 = sshll.u32 [#allocation2], 4
      %s17 = int_to_ptr.vmem [resolvable:$true] %s16
      %19 = dma.hbm_to_vmem [thread:$0]  %s0, 64, %s17, [#allocation3]
    $region5: #{tpu_custom_call.1} parent=1 // pred_fallthru
      _
    // Predicated region
    $region6: #{tpu_custom_call.1} parent=1 // pred_check
      _
    $region7: #{tpu_custom_call.1} parent=1 // pred_check_branch
      %21 = sbr.rel (0) target = $region9
    $region8: #{tpu_custom_call.1} parent=1 // pred_region
      _
    $region9: #{tpu_custom_call.1} parent=1 // pred_fallthru
      _
    // Predicated region
    $region10: #{tpu_custom_call.1} parent=1 // pred_check
      _
    $region11: #{tpu_custom_call.1} parent=1 // pred_check_branch
      %23 = sbr.rel (0) target = $region13
    $region12: #{tpu_custom_call.1} parent=1 // pred_region
      _
    $region13: #{tpu_custom_call.1} parent=1 // pred_fallthru
      _
    // Predicated region
    $region14: #{tpu_custom_call.1} parent=1 // pred_check
      _
    $region15: #{tpu_custom_call.1} parent=1 // pred_check_branch
      %25 = sbr.rel (0) target = $region17
    $region16: #{tpu_custom_call.1} parent=1 // pred_region
      %26 = dma.done [#allocation3], 64
    $region17: #{tpu_custom_call.1} parent=1 // pred_fallthru
      _
    %v27 = vld [vmem:[#allocation2] sm:$0xf]
    %v28 = vld [vmem:[%s1] sm:$0x1]
    %v30 = vlaneseq
    %v31 = vshrl.u32 %v30, 7
    %v32 = vsub.s32 0, %v31
    %v33 = vrot.slane %v28, %v32
    %v35 = vmul.f32 %v27, %v33
    %v36 = vld [vmem:[%s2] sm:$0x1]
    %v38 = vlaneseq
    %v39 = vshrl.u32 %v38, 7
    %v40 = vsub.s32 0, %v39
    %v41 = vrot.slane %v36, %v40
    %v43 = vadd.f32 %v35, %v41
    %44 = vst [vmem:[#allocation5] sm:$0xf] %v43
    // Predicated region
    $region18: #{tpu_custom_call.1} parent=1 // pred_check
      _
    $region19: #{tpu_custom_call.1} parent=1 // pred_check_branch
      %46 = sbr.rel (0) target = $region21
    $region20: #{tpu_custom_call.1} parent=1 // pred_region
      %s48 = ssub.s32 64, 64
      %49 = vsyncadd [#allocation4], %s48
      %s51 = sshll.u32 [#allocation5], 4
      %s52 = int_to_ptr.vmem [resolvable:$true] %s51
      %54 = dma.vmem_to_hbm [thread:$0]  %s52, 64, %s3, [#allocation4]
    $region21: #{tpu_custom_call.1} parent=1 // pred_fallthru
      _
    // Predicated region
    $region22: #{tpu_custom_call.1} parent=1 // pred_check
      _
    $region23: #{tpu_custom_call.1} parent=1 // pred_check_branch
      %56 = sbr.rel (0) target = $region25
    $region24: #{tpu_custom_call.1} parent=1 // pred_region
      %57 = dma.done [#allocation4], 64
    $region25: #{tpu_custom_call.1} parent=1 // pred_fallthru
      _
    %58 = vsyncpa [#allocation3], 1
    %59 = vsyncpa [#allocation4], 1

</llo_original>
